<compile_context>
chip_gen: v7x
topology: tpu7x:2x2x1
jax: 0.10.0
libtpu: 0.0.40
codegen_flags: <defaults>
</compile_context>

<pallas_src>
import functools

import jax
import jax.numpy as jnp
from jax.experimental import pallas as pl
from jax.experimental.pallas import tpu as pltpu


def _round_up(x, m):
    return ((x + m - 1) // m) * m


def _physical_vmem_bytes():
    """Per-TensorCore physical VMEM (128 MiB on v5e/v6e, 64 MiB on v7x)."""
    try:
        info = pltpu.get_tpu_info()
        v = int(getattr(info, "vmem_capacity_bytes", 0))
        if v > 0:
            return v
    except Exception:
        pass
    return 64 << 20  # conservative fallback (v7x-sized)


# Raise the scoped-VMEM limit above the 16/32 MiB defaults, with headroom for compiler
# internal scratch; re-derived per generation so a v6e-sized tile is never requested on
# v7x's 64 MiB VMEM.
_VMEM_LIMIT_BYTES = int(min((_physical_vmem_bytes() * 3) // 4, 96 << 20))
_FIXED_RESERVE_BYTES = 4 << 20  # weights + misc compiler scratch
_BLOCK_BUDGET_BYTES = max((_VMEM_LIMIT_BYTES * 7) // 10 - _FIXED_RESERVE_BYTES, 4 << 20)


def _pick_block_n(N, S, L, D, x_itemsize):
    """Largest batch tile that (a) moves >= ~2 MiB of x per grid step, (b) fits the
    per-generation VMEM budget with lane-padding-aware accounting, and (c) keeps at
    least ~4 grid steps for v7x's two TensorCores when N is large."""
    Sp = _round_up(max(S, 1), 8)       # sublane padding of the bag axis
    Lp = _round_up(max(L, 1), 128)     # lane padding of the feature axis
    Dp = _round_up(max(D, 1), 128)
    Sl = _round_up(max(S, 1), 128)     # lane padding of the attn output
    per_item = (
        2 * Sp * Lp * x_itemsize       # double-buffered x tile (lane padded in VMEM)
        + Sp * Lp * 4                  # f32 working copy of x (pooling math)
        + Sp * Lp * 4                  # a[:, :, None] * x product before the sublane reduce
        + Sp * Dp * 4                  # h = relu(x @ W1), f32
        + 2 * Lp * 4                   # double-buffered out tile
        + 2 * Sl * 4                   # double-buffered attn tile
    )
    cap_vmem = max(8, _BLOCK_BUDGET_BYTES // per_item)
    target = max(8, (2 << 20) // max(S * L * x_itemsize, 1))   # ~2 MiB of x per step
    bn = int(min(target, cap_vmem))
    if N > 32:
        # Keep >= ~4 grid steps so v7x's two TensorCores both get work and the pipeline
        # still double-buffers; irrelevant (and skipped) for tiny N.
        bn = min(bn, _round_up(pl.cdiv(N, 4), 8))
    bn = min(bn, N)
    if bn < N:
        bn = max(8, (bn // 8) * 8)     # tiled batch axis must stay sublane aligned
    return bn


def _datten_kernel(x_ref, w1_ref, w2_ref, out_ref, attn_ref, *, use_bf16_mxu):
    # x_ref:    (Bn, S, L)   batch tile of x
    # w1_ref:   (L, D)       full W1 (constant block across the grid)
    # w2_ref:   (1, D)       W2 pre-reshaped to a row in the wrapper
    # out_ref:  (Bn, L)
    # attn_ref: (Bn, S)
    Bn, S, L = x_ref.shape
    D = w1_ref.shape[-1]

    x = x_ref[...]
    xf = x.astype(jnp.float32)                                   # f32 copy for pooling math

    # Merge batch+bag for the MXU. Free when S % 8 == 0 (sublane aligned); otherwise it
    # becomes an XLU relayout (perf only, still correct).
    x2d = x.reshape(Bn * S, L)
    mxu_dtype = jnp.bfloat16 if use_bf16_mxu else jnp.float32
    lhs = x2d.astype(mxu_dtype)
    rhs = w1_ref[...].astype(mxu_dtype)

    # Attention MLP stage 1: one MXU matmul with Bn*S rows, f32 accumulation.
    h = jnp.dot(lhs, rhs, preferred_element_type=jnp.float32)    # (Bn*S, D)
    h = jnp.maximum(h, 0.0)                                       # ReLU (VPU, f32)

    # Stage 2 (width-1 projection): VPU multiply + XLU lane reduce instead of a 1-column
    # MXU matmul. (On v7x the review suggests moving this to the idle MXU; that swap
    # needs a bundle-dump check, so it is not applied blindly here.)
    w2row = w2_ref[...].astype(jnp.float32)                       # (1, D)
    logits = jnp.sum(h.reshape(Bn, S, D) * w2row[None, :, :], axis=-1)   # (Bn, S)

    # Numerically stable softmax over S (lane axis), all f32; reciprocal on the EUP
    # (exact mode keeps the 1e-5 f32 reference check).
    m = jnp.max(logits, axis=-1, keepdims=True)
    e = jnp.exp(logits - m)
    denom = jnp.sum(e, axis=-1, keepdims=True)
    a = e * pl.reciprocal(denom, approx=False)                    # (Bn, S)

    # Weighted pooling A @ x as a VPU multiply + sublane reduce (no 1-row MXU passes).
    out = jnp.sum(a[:, :, None] * xf, axis=1)                     # (Bn, L)

    out_ref[...] = out.astype(out_ref.dtype)
    attn_ref[...] = a.astype(attn_ref.dtype)


@functools.partial(jax.jit, static_argnames=("block_n", "use_bf16_mxu", "cast_x_to_bf16"))
def dattention_forward(x, w1, w2, block_n=None, use_bf16_mxu=False, cast_x_to_bf16=False):
    """x: [N, S, L]; w1: [L, D]; w2: [D, 1].

    Returns (out [N, L], attn [N, S] float32, act [N, S, L])."""
    N, S, L = x.shape
    D = w1.shape[1]

    # Optionally halve the dominant HBM read traffic (x) by streaming it as bf16; all
    # accumulation / softmax / pooling math stays f32 and the outputs keep x.dtype.
    x_in = x.astype(jnp.bfloat16) if cast_x_to_bf16 else x

    if block_n is None:
        block_n = _pick_block_n(N, S, L, D, x_in.dtype.itemsize)
    block_n = max(1, min(block_n, N))
    if block_n < N and block_n % 8 != 0:
        block_n = max(8, (block_n // 8) * 8)

    n_blocks = pl.cdiv(N, block_n)
    n_pad = n_blocks * block_n
    if n_pad != N:
        # Zero-padded rows give relu(0)=0 logits -> uniform softmax; no NaNs, sliced off below.
        x_in = jnp.pad(x_in, ((0, n_pad - N), (0, 0), (0, 0)))

    w2_row = w2.reshape(1, D)   # present W2 as a row so the kernel needs no layout shuffle

    kernel = functools.partial(_datten_kernel, use_bf16_mxu=use_bf16_mxu)

    out, attn = pl.pallas_call(
        kernel,
        out_shape=(
            jax.ShapeDtypeStruct((n_pad, L), x.dtype),
            jax.ShapeDtypeStruct((n_pad, S), jnp.float32),
        ),
        grid=(n_blocks,),
        in_specs=[
            pl.BlockSpec((block_n, S, L), lambda n: (n, 0, 0)),   # batch tile of x
            pl.BlockSpec((L, D), lambda n: (0, 0)),               # W1, constant block
            pl.BlockSpec((1, D), lambda n: (0, 0)),               # W2 row, constant block
        ],
        out_specs=(
            pl.BlockSpec((block_n, L), lambda n: (n, 0)),
            pl.BlockSpec((block_n, S), lambda n: (n, 0)),
        ),
        compiler_params=pltpu.CompilerParams(
            dimension_semantics=("parallel",),
            vmem_limit_bytes=_VMEM_LIMIT_BYTES,
        ),
    )(x_in, w1, w2_row)

    # DAttention.forward returns (x.squeeze(1), attn.squeeze(1), act.squeeze(1));
    # act is the (unmasked) input x, and for S > 1 squeeze(1) is a no-op on it.
    return out[:N], attn[:N], x


def _reference(x, w1, w2):
    h = jnp.maximum(jnp.einsum("nsl,ld->nsd", x, w1), 0.0)
    s = jnp.einsum("nsd,dk->nsk", h, w2)                  # (N, S, 1)
    a = jax.nn.softmax(jnp.swapaxes(s, -1, -2), axis=-1)  # (N, 1, S)
    out = jnp.einsum("nks,nsl->nkl", a, x)                # (N, 1, L)
    return out[:, 0, :], a[:, 0, :], x


if __name__ == "__main__":
    # Shapes consistent with the module: input_dim (L) = 32, hidden D = 128, K = 1.
    L, D = 32, 128
    key = jax.random.PRNGKey(0)
    kx, k1, k2, kx2 = jax.random.split(key, 4)

    # nn.Linear-style init (bias=False): U(-1/sqrt(fan_in), 1/sqrt(fan_in)), stored [in, out].
    w1 = jax.random.uniform(k1, (L, D), dtype=jnp.float32,
                            minval=-1.0 / jnp.sqrt(L), maxval=1.0 / jnp.sqrt(L))
    w2 = jax.random.uniform(k2, (D, 1), dtype=jnp.float32,
                            minval=-1.0 / jnp.sqrt(D), maxval=1.0 / jnp.sqrt(D))

    ok = True

    # Case 1: tiny batch (single grid step, block == full batch), exact f32 path.
    N, S = 2, 8
    x = jax.random.normal(kx, (N, S, L), dtype=jnp.float32)
    out, attn, act = dattention_forward(x, w1, w2)
    jax.block_until_ready((out, attn, act))
    r_out, r_attn, r_act = _reference(x, w1, w2)
    ok &= out.shape == (N, L) and attn.shape == (N, S) and act.shape == (N, S, L)
    ok &= bool(jnp.allclose(out, r_out, atol=1e-5, rtol=1e-5))
    ok &= bool(jnp.allclose(attn, r_attn, atol=1e-5, rtol=1e-5))
    ok &= bool(jnp.allclose(act, r_act))

    # Case 2: larger batch exercising the multi-block grid (>= 4 steps) + tail padding.
    N2, S2 = 50, 8
    x2 = jax.random.normal(kx2, (N2, S2, L), dtype=jnp.float32)
    out2, attn2, act2 = dattention_forward(x2, w1, w2)
    jax.block_until_ready((out2, attn2, act2))
    r_out2, r_attn2, r_act2 = _reference(x2, w1, w2)
    ok &= out2.shape == (N2, L) and attn2.shape == (N2, S2)
    ok &= bool(jnp.allclose(out2, r_out2, atol=1e-5, rtol=1e-5))
    ok &= bool(jnp.allclose(attn2, r_attn2, atol=1e-5, rtol=1e-5))
    ok &= bool(jnp.allclose(act2, r_act2))

    # Case 3: perf mode (bf16 x streaming + bf16 MXU operands, f32 accumulation) — the
    # recommended configuration on v6e/v7x; checked at a relaxed tolerance.
    out3, attn3, act3 = dattention_forward(x2, w1, w2, use_bf16_mxu=True, cast_x_to_bf16=True)
    jax.block_until_ready((out3, attn3, act3))
    ok &= out3.shape == (N2, L) and attn3.shape == (N2, S2)
    ok &= bool(jnp.allclose(out3, r_out2, atol=5e-2, rtol=5e-2))
    ok &= bool(jnp.allclose(attn3, r_attn2, atol=5e-2, rtol=5e-2))

    # TODO(synk): random_masking (mask_enable path) and Dropout are training/optional-path
    # features not exercised by this eval-mode forward; they are not implemented in-kernel.

    assert ok
    print("KERNEL_OK")
</pallas_src>

<mosaic_0001>
module attributes {stable_mosaic.version = 11 : i64} {
  func.func @_datten_kernel(%arg0: i32, %arg1: memref<2x8x32xf32, #tpu.memory_space<vmem>>, %arg2: memref<32x128xf32, #tpu.memory_space<vmem>>, %arg3: memref<1x128xf32, #tpu.memory_space<vmem>>, %arg4: memref<2x32xf32, #tpu.memory_space<vmem>>, %arg5: memref<2x8xf32, #tpu.memory_space<vmem>>) attributes {dimension_semantics = [#tpu.dimension_semantics<parallel>], iteration_bounds = array<i64: 1>, scalar_prefetch = 0 : i64, scratch_operands = 0 : i64, tpu.core_type = #tpu.core_type<tc>, window_params = [{transform_indices = @transform_0, window_bounds = array<i64: 2, 8, 32>}, {pipeline_mode = #tpu.pipeline_mode<synchronous>, transform_indices = @transform_1, window_bounds = array<i64: 32, 128>}, {pipeline_mode = #tpu.pipeline_mode<synchronous>, transform_indices = @transform_2, window_bounds = array<i64: 1, 128>}, {transform_indices = @transform_3, window_bounds = array<i64: 2, 32>}, {transform_indices = @transform_4, window_bounds = array<i64: 2, 8>}]} {
    %c0 = arith.constant 0 : index
    %c0_0 = arith.constant 0 : index
    %c0_1 = arith.constant 0 : index
    %0 = vector.load %arg1[%c0, %c0_0, %c0_1] : memref<2x8x32xf32, #tpu.memory_space<vmem>>, vector<2x8x32xf32>
    %1 = vector.shape_cast %0 : vector<2x8x32xf32> to vector<16x32xf32>
    %c0_2 = arith.constant 0 : index
    %c0_3 = arith.constant 0 : index
    %2 = vector.load %arg2[%c0_2, %c0_3] : memref<32x128xf32, #tpu.memory_space<vmem>>, vector<32x128xf32>
    %cst = arith.constant dense<0.000000e+00> : vector<16x128xf32>
    %3 = tpu.matmul %1, %2, %cst {dimension_numbers = #tpu.dot_dimension_numbers<[1], [0], [0], [1], [0, 0, 1, 1], [], []>} : vector<16x32xf32>, vector<32x128xf32>, vector<16x128xf32> -> vector<16x128xf32>
    %cst_4 = arith.constant 0.000000e+00 : f32
    %4 = vector.broadcast %cst_4 : f32 to vector<16x128xf32>
    %5 = arith.maximumf %3, %4 : vector<16x128xf32>
    %c0_5 = arith.constant 0 : index
    %c0_6 = arith.constant 0 : index
    %6 = vector.load %arg3[%c0_5, %c0_6] : memref<1x128xf32, #tpu.memory_space<vmem>>, vector<1x128xf32>
    %7 = vector.shape_cast %5 : vector<16x128xf32> to vector<2x8x128xf32>
    %8 = vector.shape_cast %6 : vector<1x128xf32> to vector<1x1x128xf32>
    %9 = vector.broadcast %8 : vector<1x1x128xf32> to vector<2x8x128xf32>
    %10 = arith.mulf %7, %9 : vector<2x8x128xf32>
    %cst_7 = arith.constant dense<0.000000e+00> : vector<2x8xf32>
    %11 = vector.multi_reduction <add>, %10, %cst_7 [2] : vector<2x8x128xf32> to vector<2x8xf32>
    %cst_8 = arith.constant dense<0xFF800000> : vector<2xf32>
    %12 = vector.multi_reduction <maximumf>, %11, %cst_8 [1] : vector<2x8xf32> to vector<2xf32>
    %13 = vector.shape_cast %12 : vector<2xf32> to vector<2x1xf32>
    %14 = vector.broadcast %13 : vector<2x1xf32> to vector<2x8xf32>
    %15 = arith.subf %11, %14 : vector<2x8xf32>
    %16 = math.exp %15 : vector<2x8xf32>
    %cst_9 = arith.constant dense<0.000000e+00> : vector<2xf32>
    %17 = vector.multi_reduction <add>, %16, %cst_9 [1] : vector<2x8xf32> to vector<2xf32>
    %18 = vector.shape_cast %17 : vector<2xf32> to vector<2x1xf32>
    %19 = tpu.reciprocal %18 : vector<2x1xf32> -> vector<2x1xf32>
    %20 = vector.broadcast %19 : vector<2x1xf32> to vector<2x8xf32>
    %21 = arith.mulf %16, %20 : vector<2x8xf32>
    %22 = vector.shape_cast %21 : vector<2x8xf32> to vector<2x8x1xf32>
    %23 = vector.broadcast %22 : vector<2x8x1xf32> to vector<2x8x32xf32>
    %24 = arith.mulf %23, %0 : vector<2x8x32xf32>
    %cst_10 = arith.constant dense<0.000000e+00> : vector<2x32xf32>
    %25 = vector.multi_reduction <add>, %24, %cst_10 [1] : vector<2x8x32xf32> to vector<2x32xf32>
    %c0_11 = arith.constant 0 : index
    %c0_12 = arith.constant 0 : index
    %26 = vector.load %arg4[%c0_11, %c0_12] : memref<2x32xf32, #tpu.memory_space<vmem>>, vector<2x32xf32>
    tpu.vector_store %arg4[%c0_11, %c0_12], %25 {strides = array<i32>} : memref<2x32xf32, #tpu.memory_space<vmem>>, vector<2x32xf32>,
    %c0_13 = arith.constant 0 : index
    %c0_14 = arith.constant 0 : index
    %27 = vector.load %arg5[%c0_13, %c0_14] : memref<2x8xf32, #tpu.memory_space<vmem>>, vector<2x8xf32>
    tpu.vector_store %arg5[%c0_13, %c0_14], %21 {strides = array<i32>} : memref<2x8xf32, #tpu.memory_space<vmem>>, vector<2x8xf32>,
    return
  }
  func.func @transform_0(%arg0: i32) -> (i32, i32, i32) {
    %c0_i32 = arith.constant 0 : i32
    %c0_i32_0 = arith.constant 0 : i32
    %c0_i32_1 = arith.constant 0 : i32
    return %arg0, %c0_i32, %c0_i32_0 : i32, i32, i32
  }
  func.func @transform_1(%arg0: i32) -> (i32, i32) {
    %c0_i32 = arith.constant 0 : i32
    %c0_i32_0 = arith.constant 0 : i32
    %c0_i32_1 = arith.constant 0 : i32
    return %c0_i32, %c0_i32_0 : i32, i32
  }
  func.func @transform_2(%arg0: i32) -> (i32, i32) {
    %c0_i32 = arith.constant 0 : i32
    %c0_i32_0 = arith.constant 0 : i32
    %c0_i32_1 = arith.constant 0 : i32
    return %c0_i32, %c0_i32_0 : i32, i32
  }
  func.func @transform_3(%arg0: i32) -> (i32, i32) {
    %c0_i32 = arith.constant 0 : i32
    %c0_i32_0 = arith.constant 0 : i32
    return %arg0, %c0_i32 : i32, i32
  }
  func.func @transform_4(%arg0: i32) -> (i32, i32) {
    %c0_i32 = arith.constant 0 : i32
    %c0_i32_0 = arith.constant 0 : i32
    return %arg0, %c0_i32 : i32, i32
  }
}

</mosaic_0001>

<llo_original>
// kernel: dattention_forward.1
$region0: #{dattention_forward.1}
  #allocation0 [shape = 'u32[]', space=smem, size = 0x4, offset = 0x4, fixed_abs, tag = 'smem constant byte address 0x4 - core index']
  #allocation1 [shape = 'u32[144,128]{1,0:T(1,128)}', space=vmem, size = 0x12000, scoped, tag = 'internal scratch']
  %s0 = inlined_call_operand.hbm [shape: f32[2,8,32], index: 0, kind: input, shape index: {}]
  %s1 = inlined_call_operand.hbm [shape: f32[32,128], index: 1, kind: input, shape index: {}]
  %s2 = inlined_call_operand.vmem [shape: f32[1,128], index: 2, kind: input, shape index: {}]
  %s3 = inlined_call_operand.hbm [shape: f32[2,32], index: 3, kind: output, shape index: {0}]
  %s4 = inlined_call_operand.hbm [shape: f32[2,8], index: 4, kind: output, shape index: {1}]
  %5 = xla_tuple %s3, %s4
  %s6 = sld [smem:[#allocation0]]
  $region38: #{dattention_forward.1} parent=0
    _
  %s8 = ssub.s32 1, %s6
  %s9 = scalar_select 0, %s8, %s6
  $region1: #{dattention_forward.1} parent=0
    #allocation2 [shape = 'u8[8192]{0}', space=vmem, size = 0x2000, scoped, tag = 'input window, operand 0, single buffered']
    #allocation3 [shape = 's32[1]{0}', space=sflag, size = 0x4, scoped, tag = 'scoped memory for dattention_forward.1']
    #allocation4 [shape = 's32[1]{0}', space=sflag, size = 0x4, scoped, tag = 'scoped memory for dattention_forward.1']
    #allocation5 [shape = 'u8[16384]{0}', space=vmem, size = 0x4000, scoped, tag = 'input window, operand 1, single buffered']
    #allocation6 [shape = 's32[1]{0}', space=sflag, size = 0x4, scoped, tag = 'scoped memory for dattention_forward.1']
    #allocation7 [shape = 'u8[1024]{0}', space=vmem, size = 0x400, scoped, tag = 'output window, operand 0, single buffered']
    #allocation8 [shape = 'u8[1024]{0}', space=vmem, size = 0x400, scoped, tag = 'output window, operand 1, single buffered']
    #allocation9 [shape = 's32[1]{0}', space=sflag, size = 0x4, scoped, tag = 'scoped memory for dattention_forward.1']
    %10 = vsyncpa [#allocation3], 0
    %11 = vsyncpa [#allocation6], 0
    %12 = vsyncpa [#allocation4], 0
    %13 = vsyncpa [#allocation9], 0
    // Predicated region
    $region2: #{dattention_forward.1} parent=1 // pred_check
      _
    $region3: #{dattention_forward.1} parent=1 // pred_check_branch
      %15 = sbr.rel (0) target = $region5
    $region4: #{dattention_forward.1} parent=1 // pred_region
      %s17 = ssub.s32 256, 256
      %18 = vsyncadd [#allocation3], %s17
      %s19 = sshll.u32 [#allocation2], 4
      %s20 = int_to_ptr.vmem [resolvable:$true] %s19
      %25 = dma.hbm_to_vmem [thread:$0]  %s0, 256, %s20, [#allocation3], 128, 128, 8
    $region5: #{dattention_forward.1} parent=1 // pred_fallthru
      _
    // Predicated region
    $region6: #{dattention_forward.1} parent=1 // pred_check
      _
    $region7: #{dattention_forward.1} parent=1 // pred_check_branch
      %27 = sbr.rel (0) target = $region9
    $region8: #{dattention_forward.1} parent=1 // pred_region
      %s29 = ssub.s32 512, 512
      %30 = vsyncadd [#allocation6], %s29
      %s31 = sshll.u32 [#allocation5], 4
      %s32 = int_to_ptr.vmem [resolvable:$true] %s31
      %37 = dma.hbm_to_vmem [thread:$0]  %s1, 512, %s32, [#allocation6], 128, 128, 8
    $region9: #{dattention_forward.1} parent=1 // pred_fallthru
      _
    // Predicated region
    $region10: #{dattention_forward.1} parent=1 // pred_check
      _
    $region11: #{dattention_forward.1} parent=1 // pred_check_branch
      %39 = sbr.rel (0) target = $region13
    $region12: #{dattention_forward.1} parent=1 // pred_region
      _
    $region13: #{dattention_forward.1} parent=1 // pred_fallthru
      _
    // Predicated region
    $region14: #{dattention_forward.1} parent=1 // pred_check
      _
    $region15: #{dattention_forward.1} parent=1 // pred_check_branch
      %41 = sbr.rel (0) target = $region17
    $region16: #{dattention_forward.1} parent=1 // pred_region
      %42 = dma.done [#allocation3], 256
    $region17: #{dattention_forward.1} parent=1 // pred_fallthru
      _
    // Predicated region
    $region18: #{dattention_forward.1} parent=1 // pred_check
      _
    $region19: #{dattention_forward.1} parent=1 // pred_check_branch
      %44 = sbr.rel (0) target = $region21
    $region20: #{dattention_forward.1} parent=1 // pred_region
      %45 = dma.done [#allocation6], 512
    $region21: #{dattention_forward.1} parent=1 // pred_fallthru
      _
    %v46 = vld [vmem:[#allocation2] sm:$0xff]
    %v47 = vld [vmem:[#allocation2 + $0x8] sm:$0xff]
    %v48 = vld [vmem:[#allocation5] sm:$0xff]
    %v49 = vld [vmem:[#allocation5 + $0x8] sm:$0xff]
    %v50 = vld [vmem:[#allocation5 + $0x10] sm:$0xff]
    %v51 = vld [vmem:[#allocation5 + $0x18] sm:$0xff]
    %vm52 = vcmask 261120
    %v54 = vsel %vm52, %v46, 0
    %v57 = vsel %vm52, %v47, 0
    %59 = vmatprep.subr.mxu0 0.0
    %60 = vmatpush1.msra.mxu0 %v48
    %61 = vmatprep.subr.mxu0 0.0
    %62 = vmatpush1.msra.mxu0 %v49
    %63 = vmatprep.subr.mxu0 0.0
    %64 = vmatpush1.msra.mxu0 %v50
    %65 = vmatprep.subr.mxu0 0.0
    %66 = vmatpush1.msra.mxu0 %v51
    %67 = vmatprep.subr.mxu0 0.0
    %68 = vmatpush1.msra.mxu0 0.0
    %69 = vmatprep.subr.mxu0 0.0
    %70 = vmatpush1.msra.mxu0 0.0
    %71 = vmatprep.subr.mxu0 0.0
    %72 = vmatpush1.msra.mxu0 0.0
    %73 = vmatprep.subr.mxu0 0.0
    %74 = vmatpush1.msra.mxu0 0.0
    %75 = vmatprep.subr.mxu0 0.0
    %76 = vmatpush1.msra.mxu0 0.0
    %77 = vmatprep.subr.mxu0 0.0
    %78 = vmatpush1.msra.mxu0 0.0
    %79 = vmatprep.subr.mxu0 0.0
    %80 = vmatpush1.msra.mxu0 0.0
    %81 = vmatprep.subr.mxu0 0.0
    %82 = vmatpush1.msra.mxu0 0.0
    %83 = vmatprep.subr.mxu0 0.0
    %84 = vmatpush1.msra.mxu0 0.0
    %85 = vmatprep.subr.mxu0 0.0
    %86 = vmatpush1.msra.mxu0 0.0
    %87 = vmatprep.subr.mxu0 0.0
    %88 = vmatpush1.msra.mxu0 0.0
    %89 = vmatprep.subr.mxu0 0.0
    %90 = vmatpush1.msra.mxu0 0.0
    %91 = vmatprep.subr.mxu0 0.0
    %92 = vmatpush1.msra.mxu0 0.0
    %93 = vmatprep.subr.mxu0 0.0
    %94 = vmatpush1.msra.mxu0 0.0
    %95 = vmatprep.subr.mxu0 0.0
    %96 = vmatpush1.msra.mxu0 0.0
    %97 = vmatprep.subr.mxu0 0.0
    %98 = vmatpush1.msra.mxu0 0.0
    %99 = vmatprep.subr.mxu0 0.0
    %100 = vmatpush1.msra.mxu0 0.0
    %101 = vmatprep.subr.mxu0 0.0
    %102 = vmatpush1.msra.mxu0 0.0
    %103 = vmatprep.subr.mxu0 0.0
    %104 = vmatpush1.msra.mxu0 0.0
    %105 = vmatprep.subr.mxu0 0.0
    %106 = vmatpush1.msra.mxu0 0.0
    %107 = vmatprep.subr.mxu0 0.0
    %108 = vmatpush1.msra.mxu0 0.0
    %109 = vmatprep.subr.mxu0 0.0
    %110 = vmatpush1.msra.mxu0 0.0
    %111 = vmatprep.subr.mxu0 0.0
    %112 = vmatpush1.msra.mxu0 0.0
    %113 = vmatprep.subr.mxu0 0.0
    %114 = vmatpush1.msra.mxu0 0.0
    %115 = vmatprep.subr.mxu0 0.0
    %116 = vmatpush1.msra.mxu0 0.0
    %117 = vmatprep.subr.mxu0 0.0
    %118 = vmatpush1.msra.mxu0 0.0
    %119 = vmatprep.subr.mxu0 0.0
    %120 = vmatpush1.msra.mxu0 0.0
    %121 = vmatprep.subr.mxu0 0.0
    %122 = vmatpush1.msra.mxu0 0.0
    %123 = vmatprep.mubr.f32.mxu0 0.0
    %124 = vmatmul.mubr.f32.gmra.mrb[0].mxu0 %v54
    %v125 = vpop.f32.mrb[0].mxu0
    %v126 = vadd.f32 0.0, %v125
    %v127 = vpop.f32.mrb[0].mxu0
    %128 = vmatprep.mubr.f32.mxu0 0.0
    %129 = vmatmul.mubr.f32.gmra.mrb[0].mxu0 %v57
    %v130 = vpop.f32.mrb[0].mxu0
    %v131 = vadd.f32 0.0, %v130
    %v132 = vpop.f32.mrb[0].mxu0
    %133 = vdwg.mxu0
    %v134 = vmax.f32 %v126, 0.0
    %v135 = vmax.f32 %v131, 0.0
    %v136 = vld [vmem:[%s2] sm:$0x1]
    %v138 = vlaneseq
    %v139 = vshrl.u32 %v138, 7
    %v140 = vsub.s32 0, %v139
    %v141 = vrot.slane %v136, %v140
    %v143 = vmul.f32 %v134, %v141
    %v144 = vmul.f32 %v135, %v141
    %145 = vadd.xlane.f32.xlu0 %v143
    %v146 = vpop.xlane.xlu0 %145
    %147 = vadd.xlane.f32.xlu0 %v144
    %v148 = vpop.xlane.xlu0 %147
    %v151 = vlaneseq
    %v152 = vand.u32 %v151, 127
    %v153 = vlaneseq
    %v154 = vshrl.u32 %v153, 7
    %v155 = vsub.s32 %v152, %v154
    %v156 = vrot.slane %v146, %v155
    %v157 = vlaneseq
    %v158 = vshrl.u32 %v157, 7
    %v159 = vsub.s32 %v152, %v158
    %v160 = vrot.slane %v148, %v159
    %vm161 = vcmask 1041409
    %v162 = vsel %vm161, %v160, %v156
    %vm164 = vcmask 58368
    %v165 = vsel %vm164, %v162, -inf
    %166 = vmax.xlane.f32.xlu0 %v165
    %v167 = vpop.xlane.xlu0 %166
    %v169 = vlaneseq
    %v170 = vshrl.u32 %v169, 7
    %v171 = vsub.s32 0, %v170
    %v172 = vrot.slane %v167, %v171
    %v173 = vlaneseq
    %v174 = vshrl.u32 %v173, 7
    %v175 = vsub.s32 1, %v174
    %v176 = vrot.slane %v167, %v175
    %v179 = vsub.f32 %v146, %v172
    %v180 = vsub.f32 %v148, %v176
    %v181 = vmul.f32 %v179, 1.442695
    %v182 = vpow.pop %v181
    %v183 = vmul.f32 %v180, 1.442695
    %v184 = vpow.pop %v183
    %187 = vset.pattern.permute.xlu0 0
    %188 = vperm.xlu0 %187, %v182
    %v189 = vpop.permute.xlu0 %188
    %190 = vset.pattern.permute.xlu0 0
    %191 = vperm.xlu0 %190, %v184
    %v192 = vpop.permute.xlu0 %191
    %v193 = vlaneseq
    %v194 = vshrl.u32 %v193, 7
    %v195 = vsub.s32 %v152, %v194
    %v196 = vrot.slane %v189, %v195
    %v197 = vlaneseq
    %v198 = vshrl.u32 %v197, 7
    %v199 = vsub.s32 %v152, %v198
    %v200 = vrot.slane %v192, %v199
    %v201 = vsel %vm161, %v200, %v196
    %v203 = vsel %vm164, %v201, 0.0
    %204 = vadd.xlane.f32.xlu0 %v203
    %v205 = vpop.xlane.xlu0 %204
    %v206 = vrcp.pop %v205
    %v208 = vlaneseq
    %v209 = vshrl.u32 %v208, 7
    %v210 = vsub.s32 0, %v209
    %v211 = vrot.slane %v206, %v210
    %v212 = vlaneseq
    %v213 = vshrl.u32 %v212, 7
    %v214 = vsub.s32 1, %v213
    %v215 = vrot.slane %v206, %v214
    %v218 = vmul.f32 %v182, %v211
    %v219 = vmul.f32 %v184, %v215
    %221 = vset.pattern.permute.xlu0 0
    %222 = vperm.xlu0 %221, %v218
    %v223 = vpop.permute.xlu0 %222
    %226 = vset.pattern.permute.xlu0 0
    %227 = vperm.xlu0 %226, %v219
    %v228 = vpop.permute.xlu0 %227
    %v230 = vmul.f32 %v223, %v46
    %v231 = vmul.f32 %v228, %v47
    %v232 = vsel %vm52, %v230, 0.0
    %v233 = vrot.slane %v232, 4
    %v234 = vadd.f32 %v232, %v233
    %v235 = vrot.slane %v234, 2
    %v236 = vadd.f32 %v234, %v235
    %v237 = vrot.slane %v236, 1
    %v238 = vadd.f32 %v236, %v237
    %v239 = vsel %vm52, %v231, 0.0
    %v240 = vrot.slane %v239, 4
    %v241 = vadd.f32 %v239, %v240
    %v242 = vrot.slane %v241, 2
    %v243 = vadd.f32 %v241, %v242
    %v244 = vrot.slane %v243, 1
    %v245 = vadd.f32 %v243, %v244
    %v248 = vsel %vm161, %v245, %v238
    %vm250 = vcmask 254976
    %251 = vst.msk [vmem:[#allocation7] sm:$0x3] %vm250, %v248
    %v252 = vlaneseq
    %v253 = vshrl.u32 %v252, 7
    %v254 = vsub.s32 %v152, %v253
    %v255 = vrot.slane %v223, %v254
    %v256 = vlaneseq
    %v257 = vshrl.u32 %v256, 7
    %v258 = vsub.s32 %v152, %v257
    %v259 = vrot.slane %v228, %v258
    %v260 = vsel %vm161, %v259, %v255
    %262 = vst.msk [vmem:[#allocation8] sm:$0x3] %vm164, %v260
    // Predicated region
    $region22: #{dattention_forward.1} parent=1 // pred_check
      _
    $region23: #{dattention_forward.1} parent=1 // pred_check_branch
      %264 = sbr.rel (0) target = $region25
    $region24: #{dattention_forward.1} parent=1 // pred_region
      %s266 = ssub.s32 32, 32
      %267 = vsyncadd [#allocation4], %s266
      %s269 = sshll.u32 [#allocation7], 4
      %s270 = int_to_ptr.vmem [resolvable:$true] %s269
      %272 = dma.vmem_to_hbm [thread:$0]  %s270, 32, %s3, [#allocation4]
    $region25: #{dattention_forward.1} parent=1 // pred_fallthru
      _
    // Predicated region
    $region26: #{dattention_forward.1} parent=1 // pred_check
      _
    $region27: #{dattention_forward.1} parent=1 // pred_check_branch
      %274 = sbr.rel (0) target = $region29
    $region28: #{dattention_forward.1} parent=1 // pred_region
      %s276 = ssub.s32 32, 32
      %277 = vsyncadd [#allocation9], %s276
      %s279 = sshll.u32 [#allocation8], 4
      %s280 = int_to_ptr.vmem [resolvable:$true] %s279
      %282 = dma.vmem_to_hbm [thread:$0]  %s280, 32, %s4, [#allocation9]
    $region29: #{dattention_forward.1} parent=1 // pred_fallthru
      _
    // Predicated region
    $region30: #{dattention_forward.1} parent=1 // pred_check
      _
    $region31: #{dattention_forward.1} parent=1 // pred_check_branch
      %284 = sbr.rel (0) target = $region33
    $region32: #{dattention_forward.1} parent=1 // pred_region
      %285 = dma.done [#allocation4], 32
    $region33: #{dattention_forward.1} parent=1 // pred_fallthru
      _
    // Predicated region
    $region34: #{dattention_forward.1} parent=1 // pred_check
      _
    $region35: #{dattention_forward.1} parent=1 // pred_check_branch
      %287 = sbr.rel (0) target = $region37
    $region36: #{dattention_forward.1} parent=1 // pred_region
      %288 = dma.done [#allocation9], 32
    $region37: #{dattention_forward.1} parent=1 // pred_fallthru
      _
    %289 = vsyncpa [#allocation3], 1
    %290 = vsyncpa [#allocation6], 1
    %291 = vsyncpa [#allocation4], 1
    %292 = vsyncpa [#allocation9], 1

</llo_original>
